<compile_context>
chip_gen: v7x
topology: tpu7x:2x2x1
jax: 0.10.0
libtpu: 0.0.40
codegen_flags: <defaults>
</compile_context>

<pallas_src>
import functools

import jax
import jax.numpy as jnp
from jax.experimental import pallas as pl
from jax.experimental.pallas import tpu as pltpu


def _round_up(a: int, m: int) -> int:
    return ((a + m - 1) // m) * m


def _round_down(a: int, m: int) -> int:
    return (a // m) * m


def _vmem_capacity_bytes() -> int:
    try:
        return int(pltpu.get_tpu_info().vmem_capacity_bytes)
    except Exception:
        return 64 << 20  # conservative (v7x per-core size); safe on every generation


def _clickbait_kernel(x_ref, w_ref, b_ref, o_ref, acc_ref, *, use_mxu, d_total, tk):
    # x_ref: (tb, tk) VMEM      w_ref: (tk/D, 1) or (1, tk) VMEM
    # b_ref: (1, 1) SMEM        o_ref: (1, tb) VMEM       acc_ref: (tb, 1) f32 VMEM
    k = pl.program_id(1)
    nk = pl.num_programs(1)

    @pl.when(k == 0)
    def _init():
        acc_ref[...] = jnp.zeros_like(acc_ref)

    if use_mxu:
        # Narrow D: let the (otherwise idle) MXU do the reduction, f32 accumulate.
        partial = jnp.dot(x_ref[...], w_ref[...], preferred_element_type=jnp.float32)
    else:
        # Wide D: VPU multiply + XLU lane reduce; keep the MXU out of the picture.
        xf = x_ref[...].astype(jnp.float32)
        wf = w_ref[...].astype(jnp.float32)          # (1, tk) broadcasts over rows
        prod = xf * wf
        if d_total % tk:                             # ragged last K tile -> mask OOB lanes
            col = jax.lax.broadcasted_iota(jnp.int32, prod.shape, 1)
            prod = jnp.where(k * tk + col < d_total, prod, 0.0)
        partial = jnp.sum(prod, axis=-1, keepdims=True)          # (tb, 1)

    acc_ref[...] += partial

    @pl.when(k == nk - 1)
    def _finish():
        # Lane-dense (1, tb) store; sigmoid's exp/recip go through the EUP.
        logits = acc_ref[...].T + b_ref[0, 0]
        o_ref[...] = jax.nn.sigmoid(logits).astype(o_ref.dtype)


def clickbait_classifier_forward(x, weight, bias, *, block_b=1024, block_d=None,
                                 force_pallas=False):
    """x: [B, D], weight: [1, D], bias: [1]  ->  [B, 1]   (sigmoid(x @ W^T + b))."""
    B, D = x.shape
    out_dtype = x.dtype
    itemsize = jnp.dtype(x.dtype).itemsize

    # ---- tiny-problem fast path: one fused XLA op beats any kernel launch ----
    small = (B < 128) or (_round_up(B, 128) * D * itemsize <= (1 << 20))
    if small and not force_pallas:
        logits = jnp.dot(x.astype(jnp.float32), weight.astype(jnp.float32).T)
        y = jax.nn.sigmoid(logits + bias.astype(jnp.float32))
        return y.astype(out_dtype).reshape(B, 1)

    # ---- generation-aware VMEM budgets (one constant drives both) ----
    vmem_cap = _vmem_capacity_bytes()
    x_budget = (vmem_cap * 5) // 8        # double-buffered x tiles: ~80 MiB (v5e/v6e), ~40 MiB (v7x)
    vmem_ceiling = (vmem_cap * 3) // 4    # vmem_limit clamp:        ~96 MiB          / ~48 MiB

    x_k = x
    if B < 128:                           # only reachable with force_pallas
        x_k = jnp.pad(x, ((0, 128 - B), (0, 0)))
    rows = x_k.shape[0]

    # ---- batch tile: multiple of 128, never larger than the batch, >=2 grid steps ----
    tb = max(128, _round_down(int(block_b), 128))
    tb = min(tb, _round_down(rows, 128))
    if rows >= 256:
        tb = min(tb, max(128, _round_down(rows // 2, 128)))   # megacore: both TCs get work

    # ---- feature tile: keep all of D per step if it fits; otherwise tile D,
    #      preferring to keep batch tiles >= 512 rows (near HBM roofline). ----
    def _cols_fit(rows_tile):
        return max(128, _round_down(x_budget // (2 * rows_tile * itemsize), 128))

    tb_floor = min(tb, 512)
    while tb > tb_floor and _cols_fit(tb) < D:
        tb -= 128

    if block_d is not None:
        tk = max(128, _round_down(int(block_d), 128))
    else:
        tk = _cols_fit(tb)
    if tk >= D:
        tk = D

    nb = pl.cdiv(rows, tb)
    nk = pl.cdiv(D, tk)

    # ---- reduction unit: MXU mat-vec for narrow D, VPU+XLU otherwise ----
    mxu_d_threshold = 384 if vmem_cap <= (64 << 20) else 192
    use_mxu = (nk == 1) and (D <= mxu_d_threshold)

    if use_mxu:
        w_arg = weight.reshape(D, 1).astype(x.dtype)
        w_spec = pl.BlockSpec((D, 1), lambda i, k: (0, 0))     # resident (D, 1)
    else:
        w_arg = weight.reshape(1, D)
        w_spec = pl.BlockSpec((1, tk), lambda i, k: (0, k))    # per-K weight slice
    bias2d = bias.reshape(1, 1).astype(jnp.float32)

    b_out = nb * tb                                            # full (1, tb) output blocks only
    vmem_bytes = (2 * tb * tk * itemsize                       # double-buffered x tiles
                  + 4 * max(tb, tk) * 4                        # weight + output buffers
                  + tb * 4                                     # accumulator scratch
                  + (8 << 20))                                 # headroom
    vmem_limit = int(min(max(vmem_bytes, 16 << 20), vmem_ceiling))

    out = pl.pallas_call(
        functools.partial(_clickbait_kernel, use_mxu=use_mxu, d_total=D, tk=tk),
        out_shape=jax.ShapeDtypeStruct((1, b_out), out_dtype),
        grid=(nb, nk),
        in_specs=[
            pl.BlockSpec((tb, tk), lambda i, k: (i, k)),       # stream x batch x feature tiles
            w_spec,
            pl.BlockSpec(memory_space=pltpu.SMEM),             # bias scalar in SMEM
        ],
        out_specs=pl.BlockSpec((1, tb), lambda i, k: (0, i)),  # lane-dense output tile
        scratch_shapes=[pltpu.VMEM((tb, 1), jnp.float32)],     # per-row logit accumulator
        compiler_params=pltpu.CompilerParams(
            dimension_semantics=("parallel", "arbitrary"),
            vmem_limit_bytes=vmem_limit,
        ),
    )(x_k, w_arg, bias2d)

    return out[0, :B].reshape(B, 1)


def reference_forward(x, weight, bias):
    return jax.nn.sigmoid(x @ weight.T + bias)


if __name__ == "__main__":
    key = jax.random.PRNGKey(0)

    def make_case(case_key, B, D):
        kx, kw, kb = jax.random.split(case_key, 3)
        bound = 1.0 / (D ** 0.5)
        x = jax.random.normal(kx, (B, D), dtype=jnp.float32)
        w = jax.random.uniform(kw, (1, D), minval=-bound, maxval=bound, dtype=jnp.float32)
        b = jax.random.uniform(kb, (1,), minval=-bound, maxval=bound, dtype=jnp.float32)
        return x, w, b

    cases = [
        # (B, D, kwargs)                        path exercised
        (8, 32, {}),                          # tiny-problem XLA fast path (module's typical demo size)
        (640, 768, {}),                       # Pallas: VPU reduce, ragged last batch tile, 3-step grid
        (384, 160, dict(force_pallas=True)),  # Pallas: MXU mat-vec (narrow D)
        (512, 1000, dict(block_d=384)),       # Pallas: K-tiled accumulator + masked ragged K tile
    ]
    keys = jax.random.split(key, len(cases))
    for case_key, (B, D, kw) in zip(keys, cases):
        x, w, b = make_case(case_key, B, D)
        out = jax.block_until_ready(clickbait_classifier_forward(x, w, b, **kw))
        ref = reference_forward(x, w, b)
        assert out.shape == (B, 1), (out.shape, B)
        err = float(jnp.max(jnp.abs(out - ref)))
        assert err < 5e-5, (B, D, err)

    print("KERNEL_OK")
</pallas_src>

<mosaic_0001>
module attributes {stable_mosaic.version = 11 : i64} {
  func.func @_clickbait_kernel(%arg0: i32, %arg1: i32, %arg2: memref<256x768xf32, #tpu.memory_space<vmem>>, %arg3: memref<1x768xf32, #tpu.memory_space<vmem>>, %arg4: memref<1x1xf32, #tpu.memory_space<smem>>, %arg5: memref<1x256xf32, #tpu.memory_space<vmem>>, %arg6: memref<256x1xf32, #tpu.memory_space<vmem>>) attributes {dimension_semantics = [#tpu.dimension_semantics<parallel>, #tpu.dimension_semantics<arbitrary>], iteration_bounds = array<i64: 3, 1>, scalar_prefetch = 0 : i64, scratch_operands = 1 : i64, tpu.core_type = #tpu.core_type<tc>, window_params = [{transform_indices = @transform_0, window_bounds = array<i64: 256, 768>}, {transform_indices = @transform_1, window_bounds = array<i64: 1, 768>}, {transform_indices = @transform_2, window_bounds = array<i64: 1, 1>}, {transform_indices = @transform_3, window_bounds = array<i64: 1, 256>}]} {
    %c0_i32 = arith.constant 0 : i32
    %0 = arith.cmpi eq, %arg1, %c0_i32 : i32
    %1 = arith.extui %0 : i1 to i32
    %c0_i32_0 = arith.constant 0 : i32
    %2 = arith.cmpi ne, %1, %c0_i32_0 : i32
    scf.if %2 {
      %cst_10 = arith.constant 0.000000e+00 : f32
      %15 = vector.broadcast %cst_10 : f32 to vector<256x1xf32>
      %c0_11 = arith.constant 0 : index
      %c0_12 = arith.constant 0 : index
      %16 = vector.load %arg6[%c0_11, %c0_12] : memref<256x1xf32, #tpu.memory_space<vmem>>, vector<256x1xf32>
      tpu.vector_store %arg6[%c0_11, %c0_12], %15 {strides = array<i32>} : memref<256x1xf32, #tpu.memory_space<vmem>>, vector<256x1xf32>,
    } else {
    }
    %c0 = arith.constant 0 : index
    %c0_1 = arith.constant 0 : index
    %3 = vector.load %arg2[%c0, %c0_1] : memref<256x768xf32, #tpu.memory_space<vmem>>, vector<256x768xf32>
    %c0_2 = arith.constant 0 : index
    %c0_3 = arith.constant 0 : index
    %4 = vector.load %arg3[%c0_2, %c0_3] : memref<1x768xf32, #tpu.memory_space<vmem>>, vector<1x768xf32>
    %5 = vector.broadcast %4 : vector<1x768xf32> to vector<256x768xf32>
    %6 = arith.mulf %3, %5 : vector<256x768xf32>
    %cst = arith.constant dense<0.000000e+00> : vector<256xf32>
    %7 = vector.multi_reduction <add>, %6, %cst [1] : vector<256x768xf32> to vector<256xf32>
    %8 = vector.shape_cast %7 : vector<256xf32> to vector<256x1xf32>
    %c0_4 = arith.constant 0 : index
    %c0_5 = arith.constant 0 : index
    %9 = vector.load %arg6[%c0_4, %c0_5] : memref<256x1xf32, #tpu.memory_space<vmem>>, vector<256x1xf32>
    %10 = arith.addf %9, %8 : vector<256x1xf32>
    %c0_6 = arith.constant 0 : index
    %c0_7 = arith.constant 0 : index
    %11 = vector.load %arg6[%c0_6, %c0_7] : memref<256x1xf32, #tpu.memory_space<vmem>>, vector<256x1xf32>
    tpu.vector_store %arg6[%c0_6, %c0_7], %10 {strides = array<i32>} : memref<256x1xf32, #tpu.memory_space<vmem>>, vector<256x1xf32>,
    %c0_i32_8 = arith.constant 0 : i32
    %12 = arith.cmpi eq, %arg1, %c0_i32_8 : i32
    %13 = arith.extui %12 : i1 to i32
    %c0_i32_9 = arith.constant 0 : i32
    %14 = arith.cmpi ne, %13, %c0_i32_9 : i32
    scf.if %14 {
      %c0_10 = arith.constant 0 : index
      %c0_11 = arith.constant 0 : index
      %15 = vector.load %arg6[%c0_10, %c0_11] : memref<256x1xf32, #tpu.memory_space<vmem>>, vector<256x1xf32>
      %16 = tpu.transpose %15, [1, 0] : vector<256x1xf32> -> vector<1x256xf32>
      %c0_12 = arith.constant 0 : index
      %c0_13 = arith.constant 0 : index
      %17 = memref.load %arg4[%c0_12, %c0_13] : memref<1x1xf32, #tpu.memory_space<smem>>
      %18 = vector.broadcast %17 : f32 to vector<1x256xf32>
      %19 = arith.addf %16, %18 : vector<1x256xf32>
      %20 = arith.negf %19 : vector<1x256xf32>
      %21 = math.exp %20 : vector<1x256xf32>
      %cst_14 = arith.constant 1.000000e+00 : f32
      %22 = vector.broadcast %cst_14 : f32 to vector<1x256xf32>
      %23 = arith.addf %22, %21 : vector<1x256xf32>
      %24 = arith.divf %22, %23 : vector<1x256xf32>
      %c0_15 = arith.constant 0 : index
      %c0_16 = arith.constant 0 : index
      %25 = vector.load %arg5[%c0_15, %c0_16] : memref<1x256xf32, #tpu.memory_space<vmem>>, vector<1x256xf32>
      tpu.vector_store %arg5[%c0_15, %c0_16], %24 {strides = array<i32>} : memref<1x256xf32, #tpu.memory_space<vmem>>, vector<1x256xf32>,
    } else {
    }
    return
  }
  func.func @transform_0(%arg0: i32, %arg1: i32) -> (i32, i32) {
    %c0_i32 = arith.constant 0 : i32
    return %arg0, %arg1 : i32, i32
  }
  func.func @transform_1(%arg0: i32, %arg1: i32) -> (i32, i32) {
    %c0_i32 = arith.constant 0 : i32
    %c0_i32_0 = arith.constant 0 : i32
    return %c0_i32, %arg1 : i32, i32
  }
  func.func @transform_2(%arg0: i32, %arg1: i32) -> (i32, i32) {
    %c0_i32 = arith.constant 0 : i32
    %c0_i32_0 = arith.constant 0 : i32
    %c0_i32_1 = arith.constant 0 : i32
    return %c0_i32, %c0_i32_0 : i32, i32
  }
  func.func @transform_3(%arg0: i32, %arg1: i32) -> (i32, i32) {
    %c0_i32 = arith.constant 0 : i32
    %c0_i32_0 = arith.constant 0 : i32
    return %c0_i32, %arg0 : i32, i32
  }
}

</mosaic_0001>

<llo_original>
// kernel: tpu_custom_call.1
$region0: #{tpu_custom_call.1}
  #allocation0 [shape = 'u32[]', space=smem, size = 0x4, offset = 0x4, fixed_abs, tag = 'smem constant byte address 0x4 - core index']
  #allocation1 [shape = 'u32[144,128]{1,0:T(1,128)}', space=vmem, size = 0x12000, scoped, tag = 'internal scratch']
  #allocation2 [shape = 'f32[256,1]{1,0:T(8,128)}', space=vmem, size = 0x20000, scoped, tag = 'scratch operand']
  #allocation3 [shape = 'f32[1,1]{1,0:T(1,128)S(6)}', space=smem, size = 0x200, scoped, tag = 'scoped memory for tpu_custom_call.1']
  %s0 = inlined_call_operand.hbm [shape: f32[640,768], index: 0, kind: input, shape index: {}]
  %s1 = inlined_call_operand.hbm [shape: f32[1,768], index: 1, kind: input, shape index: {}]
  %s2 = inlined_call_operand.<no memory space> [shape: f32[1,1], index: 2, kind: input, shape index: {}]
  %s3 = inlined_call_operand.hbm [shape: f32[1,768], index: 3, kind: output, shape index: {}]
  %s4 = sld [smem:[#allocation0]]
  $region61: #{tpu_custom_call.1} parent=0
    _
  %s6 = ssub.s32 1, %s4
  %s7 = scalar_select 0, %s6, %s4
  %8 = sst [smem:[#allocation3]] %s2
  $region1: #{tpu_custom_call.1} parent=0
    #allocation4 [shape = 'u8[1572864]{0}', space=vmem, size = 0x180000, scoped, tag = 'input window, operand 0']
    #allocation5 [shape = 's32[2]{0}', space=sflag, size = 0x8, scoped, tag = 'scoped memory for tpu_custom_call.1']
    #allocation6 [shape = 's32[2]{0}', space=sflag, size = 0x8, scoped, tag = 'scoped memory for tpu_custom_call.1']
    #allocation7 [shape = 'u8[3072]{0}', space=vmem, size = 0xc00, scoped, tag = 'input window, operand 1, single buffered']
    #allocation8 [shape = 's32[1]{0}', space=sflag, size = 0x4, scoped, tag = 'scoped memory for tpu_custom_call.1']
    #allocation9 [shape = 'u8[2048]{0}', space=vmem, size = 0x800, scoped, tag = 'output window, operand 0']
    %9 = vsyncpa [#allocation5], 0
    %s10 = scalar_lea.sflag [#allocation5], 1
    %11 = vsyncpa %s10, 0
    %12 = vsyncpa [#allocation8], 0
    %13 = vsyncpa [#allocation6], 0
    %s14 = scalar_lea.sflag [#allocation6], 1
    %15 = vsyncpa %s14, 0
    loop: start=0, step=1, limit=5
    $region2: #{tpu_custom_call.1} parent=1 // loop_pre_header
      _
    $region3: #{tpu_custom_call.1} parent=1 // loop_header
      %s17 = sphi 0, %s21
      %p18 = scmp.ge.s32.totalorder %s17, 5
      %s24 = sphi 0, %s36
      %s25 = sphi 0, %s32
      %s26 = sphi 0, %s24
      %s27 = sphi 0, %s25
      %s28 = sphi 0, %s26
      %s29 = sphi 0, %s27
      %s41 = sphi 0, %s43
      %s44 = sphi 0, %s41
      %s45 = sphi 0, %s44
      %s61 = sphi 0, %s45
      %s67 = sphi 0, %s69
      %s70 = sphi 0, %s67
      %s71 = sphi 0, %s70
      %s87 = sphi 0, %s71
      %s91 = sphi 0, %s91
      %s93 = sphi 0, %s91
      %s94 = sphi 0, %s93
      %s108 = sphi 0, %s94
      %s114 = sphi 0, %s116
      %s117 = sphi 0, %s114
      %s118 = sphi 0, %s117
      %s134 = sphi 0, %s118
    $region4: #{tpu_custom_call.1} parent=1 // loop_header_branch
      %20 = sbr.rel (%p18) target = $region8
    $region5: #{tpu_custom_call.1} parent=1 // loop_body
      %s22 = ssub.s32 %s17, 1
      %s23 = ssub.s32 %s17, 2
      %s30 = sadd.s32 1, %s25
      %p31 = scmp.ge.s32.totalorder %s30, 1
      %s32 = scalar_select %p31, 0, %s30
      %s33 = sadd.s32 1, %s24
      %s34 = scalar_select %p31, %s33, %s24
      %p35 = scmp.ge.s32.totalorder %s34, 3
      %s36 = scalar_select %p35, 0, %s34
      %s37 = ssub.s32 %s24, %s36
      %s38 = ssub.s32 %s25, %s32
      %s39 = sor.u32 %s37, %s38
      %p40 = scmp.eq.s32.totalorder %s39, 0
      %s42 = sadd.s32 %s41, 1
      %s43 = scalar_select %p40, %s41, %s42
      %p46 = pneg %p40
      %p47 = scmp.eq.s32.totalorder %s17, 2
      %p48 = por %p46, %p47
      %p49 = scmp.ne.s32.totalorder %s41, %s44
      %p50 = scmp.eq.s32.totalorder %s17, 0
      %p51 = por %p49, %p50
      %p52 = scmp.ne.s32.totalorder %s41, %s44
      %p53 = scmp.eq.s32.totalorder %s22, 2
      %p54 = por %p52, %p53
      %p55 = scmp.ne.s32.totalorder %s44, %s45
      %p56 = scmp.eq.s32.totalorder %s22, 0
      %p57 = por %p55, %p56
      %p58 = scmp.ne.s32.totalorder %s44, %s45
      %p59 = scmp.eq.s32.totalorder %s23, 2
      %p60 = por %p58, %p59
      %p62 = scmp.ne.s32.totalorder %s45, %s61
      %p63 = scmp.eq.s32.totalorder %s23, 0
      %p64 = por %p62, %p63
      %s65 = ssub.s32 %s25, %s32
      %p66 = scmp.eq.s32.totalorder %s65, 0
      %s68 = sadd.s32 %s67, 1
      %s69 = scalar_select %p66, %s67, %s68
      %p72 = pneg %p66
      %p73 = scmp.eq.s32.totalorder %s17, 2
      %p74 = por %p72, %p73
      %p75 = scmp.ne.s32.totalorder %s67, %s70
      %p76 = scmp.eq.s32.totalorder %s17, 0
      %p77 = por %p75, %p76
      %p78 = scmp.ne.s32.totalorder %s67, %s70
      %p79 = scmp.eq.s32.totalorder %s22, 2
      %p80 = por %p78, %p79
      %p81 = scmp.ne.s32.totalorder %s70, %s71
      %p82 = scmp.eq.s32.totalorder %s22, 0
      %p83 = por %p81, %p82
      %p84 = scmp.ne.s32.totalorder %s70, %s71
      %p85 = scmp.eq.s32.totalorder %s23, 2
      %p86 = por %p84, %p85
      %p88 = scmp.ne.s32.totalorder %s71, %s87
      %p89 = scmp.eq.s32.totalorder %s23, 0
      %p90 = por %p88, %p89
      %s92 = sadd.s32 %s91, 1
      %p95 = scmp.eq.s32.totalorder %s17, 2
      %p96 = scmp.ne.s32.totalorder %s91, %s93
      %p97 = scmp.eq.s32.totalorder %s17, 0
      %p98 = por %p96, %p97
      %p99 = scmp.ne.s32.totalorder %s91, %s93
      %p100 = scmp.eq.s32.totalorder %s22, 2
      %p101 = por %p99, %p100
      %p102 = scmp.ne.s32.totalorder %s93, %s94
      %p103 = scmp.eq.s32.totalorder %s22, 0
      %p104 = por %p102, %p103
      %p105 = scmp.ne.s32.totalorder %s93, %s94
      %p106 = scmp.eq.s32.totalorder %s23, 2
      %p107 = por %p105, %p106
      %p109 = scmp.ne.s32.totalorder %s94, %s108
      %p110 = scmp.eq.s32.totalorder %s23, 0
      %p111 = por %p109, %p110
      %s112 = ssub.s32 %s24, %s36
      %p113 = scmp.eq.s32.totalorder %s112, 0
      %s115 = sadd.s32 %s114, 1
      %s116 = scalar_select %p113, %s114, %s115
      %p119 = pneg %p113
      %p120 = scmp.eq.s32.totalorder %s17, 2
      %p121 = por %p119, %p120
      %p122 = scmp.ne.s32.totalorder %s114, %s117
      %p123 = scmp.eq.s32.totalorder %s17, 0
      %p124 = por %p122, %p123
      %p125 = scmp.ne.s32.totalorder %s114, %s117
      %p126 = scmp.eq.s32.totalorder %s22, 2
      %p127 = por %p125, %p126
      %p128 = scmp.ne.s32.totalorder %s117, %s118
      %p129 = scmp.eq.s32.totalorder %s22, 0
      %p130 = por %p128, %p129
      %p131 = scmp.ne.s32.totalorder %s117, %s118
      %p132 = scmp.eq.s32.totalorder %s23, 2
      %p133 = por %p131, %p132
      %p135 = scmp.ne.s32.totalorder %s118, %s134
      %p136 = scmp.eq.s32.totalorder %s23, 0
      %p137 = por %p135, %p136
      %p138 = scmp.le.s32.totalorder 1, %s17
      %p139 = scmp.lt.s32.totalorder %s17, 4
      %p140 = pnand %p138, %p139
      %p141 = pneg %p140
      // Predicated region
      $region9: #{tpu_custom_call.1} parent=5 // pred_check
        _
      $region10: #{tpu_custom_call.1} parent=5 // pred_check_branch
        %143 = sbr.rel (%p140) target = $region12
      $region11: #{tpu_custom_call.1} parent=5 // pred_region
        %s144 = ssub.s32 %s17, 1
        // Predicated region
        $region13: #{tpu_custom_call.1} parent=11 // pred_check
          %p145 = pneg %p83
        $region14: #{tpu_custom_call.1} parent=11 // pred_check_branch
          %147 = sbr.rel (%p145) target = $region16
        $region15: #{tpu_custom_call.1} parent=11 // pred_region
          %s148 = smul.u32 6, %s27
          %s150 = ssub.s32 96, 96
          %151 = vsyncadd [#allocation8], %s150
          %s152 = smul.addr %s148, 16
          %s153 = scalar_lea.hbm %s1, %s152
          %s155 = sshll.u32 [#allocation7], 4
          %s156 = int_to_ptr.vmem [resolvable:$true] %s155
          %158 = dma.hbm_to_vmem [thread:$0]  %s153, 96, %s156, [#allocation8]
        $region16: #{tpu_custom_call.1} parent=11 // pred_fallthru
          _
        // Predicated region
        $region17: #{tpu_custom_call.1} parent=11 // pred_check
          %p159 = pneg %p104
        $region18: #{tpu_custom_call.1} parent=11 // pred_check_branch
          %161 = sbr.rel (%p159) target = $region20
        $region19: #{tpu_custom_call.1} parent=11 // pred_region
          _
        $region20: #{tpu_custom_call.1} parent=11 // pred_fallthru
          _
      $region12: #{tpu_custom_call.1} parent=5 // pred_fallthru
        _
      %p162 = scmp.lt.s32.totalorder %s17, 3
      // Predicated region
      $region21: #{tpu_custom_call.1} parent=5 // pred_check
        %p163 = pneg %p162
      $region22: #{tpu_custom_call.1} parent=5 // pred_check_branch
        %165 = sbr.rel (%p163) target = $region24
      $region23: #{tpu_custom_call.1} parent=5 // pred_region
        // Predicated region
        $region25: #{tpu_custom_call.1} parent=23 // pred_check
          %p166 = pneg %p51
        $region26: #{tpu_custom_call.1} parent=23 // pred_check_branch
          %168 = sbr.rel (%p166) target = $region28
        $region27: #{tpu_custom_call.1} parent=23 // pred_region
          %s169 = sand.u32 %s41, 1
          %s170 = scalar_lea.sflag [#allocation5], %s169
          %s171 = sand.u32 %s41, 1
          %s172 = smul.addr %s171, 1536
          %s173 = scalar_lea.vmem [#allocation4], %s172
          %s174 = smul.u32 32, %s24
          %s175 = smul.u32 6, %s25
          %s176 = ssub.s32 80, %s174
          %p177 = scmp.lt.s32.totalorder %s176, 32
          %s178 = scalar_select %p177, %s176, 32
          %s179 = smul.u32 128, %s178
          %s180 = smul.u32 %s179, 6
          %s182 = ssub.s32 24576, %s180
          %183 = vsyncadd %s170, %s182
          %p184 = scmp.ne.s32.totalorder 0, %s180
          %s185 = smul.addr %s174, 6
          %s186 = sadd.s32 %s175, %s185
          %s187 = smul.addr %s186, 128
          %s188 = scalar_lea.hbm %s0, %s187
          %s189 = smul.u32 48, %s178
          %s190 = sshll.u32 %s173, 4
          %s191 = int_to_ptr.vmem [resolvable:$true] %s190
          %s192 = sshll.u32 %s189, 4
          %196 = dma.hbm_to_vmem [thread:$0]  (%p184), %s188, %s192, %s191, %s170, 768, 768, 48
        $region28: #{tpu_custom_call.1} parent=23 // pred_fallthru
          _
      $region24: #{tpu_custom_call.1} parent=5 // pred_fallthru
        _
      %p197 = scmp.le.s32.totalorder 1, %s17
      %p198 = scmp.lt.s32.totalorder %s17, 4
      %p199 = pnand %p197, %p198
      %p200 = pneg %p199
      // Predicated region
      $region29: #{tpu_custom_call.1} parent=5 // pred_check
        _
      $region30: #{tpu_custom_call.1} parent=5 // pred_check_branch
        %202 = sbr.rel (%p199) target = $region32
      $region31: #{tpu_custom_call.1} parent=5 // pred_region
        %s203 = ssub.s32 %s17, 1
        %s204 = sand.u32 %s44, 1
        %s205 = scalar_lea.sflag [#allocation5], %s204
        %s206 = sand.u32 %s44, 1
        %s207 = smul.addr %s206, 1536
        %s208 = scalar_lea.vmem [#allocation4], %s207
        // Predicated region
        $region33: #{tpu_custom_call.1} parent=31 // pred_check
          %p209 = pneg %p57
        $region34: #{tpu_custom_call.1} parent=31 // pred_check_branch
          %211 = sbr.rel (%p209) target = $region36
        $region35: #{tpu_custom_call.1} parent=31 // pred_region
          %212 = dma.done %s205, 24576
        $region36: #{tpu_custom_call.1} parent=31 // pred_fallthru
          _
        // Predicated region
        $region37: #{tpu_custom_call.1} parent=31 // pred_check
          %p213 = pneg %p83
        $region38: #{tpu_custom_call.1} parent=31 // pred_check_branch
          %215 = sbr.rel (%p213) target = $region40
        $region39: #{tpu_custom_call.1} parent=31 // pred_region
          %216 = dma.done [#allocation8], 96
        $region40: #{tpu_custom_call.1} parent=31 // pred_fallthru
          _
        %s217 = sand.u32 %s44, 1
        %s218 = scalar_lea.sflag [#allocation5], %s217
        %s219 = sand.u32 %s44, 1
        %s220 = smul.addr %s219, 1536
        %s221 = scalar_lea.vmem [#allocation4], %s220
        %p222 = pneg %p57
        %p223 = pneg %p54
        %p224 = pneg %p83
        %p225 = pneg %p80
        %p226 = pneg %p104
        %p227 = pneg %p101
        %p228 = pneg %p130
        %p229 = pneg %p127
        %s230 = sand.u32 %s117, 1
        %s231 = scalar_lea.sflag [#allocation6], %s230
        %s232 = sand.u32 %s117, 1
        %s233 = smul.addr %s232, 2
        %s234 = scalar_lea.vmem [#allocation9], %s233
        %s235 = smul.u32 32, %s26
        %s236 = smul.u32 6, %s27
        %s237 = ssub.s32 80, %s235
        %p238 = scmp.lt.s32.totalorder %s237, 32
        %s239 = scalar_select %p238, %s237, 32
        %s240 = smul.u32 128, %s239
        %s241 = smul.u32 %s240, 6
        %s242 = smul.u32 6, %s27
        %s243 = smul.u32 2, %s26
        %p244 = scmp.eq.s32.totalorder %s27, 0
        // Predicated region
        $region41: #{tpu_custom_call.1} parent=31 // pred_check
          %p245 = pneg %p244
        $region42: #{tpu_custom_call.1} parent=31 // pred_check_branch
          %247 = sbr.rel (%p245) target = $region44
        $region43: #{tpu_custom_call.1} parent=31 // pred_region
          %vm248 = vcmask 7168
          %249 = vst.msk [vmem:[#allocation2] sm:$0xff] %vm248, 0.0
          %250 = vst.msk [vmem:[#allocation2 + $0x8] sm:$0xff] %vm248, 0.0
          %251 = vst.msk [vmem:[#allocation2 + $0x10] sm:$0xff] %vm248, 0.0
          %252 = vst.msk [vmem:[#allocation2 + $0x18] sm:$0xff] %vm248, 0.0
          %253 = vst.msk [vmem:[#allocation2 + $0x20] sm:$0xff] %vm248, 0.0
          %254 = vst.msk [vmem:[#allocation2 + $0x28] sm:$0xff] %vm248, 0.0
          %255 = vst.msk [vmem:[#allocation2 + $0x30] sm:$0xff] %vm248, 0.0
          %256 = vst.msk [vmem:[#allocation2 + $0x38] sm:$0xff] %vm248, 0.0
          %257 = vst.msk [vmem:[#allocation2 + $0x40] sm:$0xff] %vm248, 0.0
          %258 = vst.msk [vmem:[#allocation2 + $0x48] sm:$0xff] %vm248, 0.0
          %259 = vst.msk [vmem:[#allocation2 + $0x50] sm:$0xff] %vm248, 0.0
          %260 = vst.msk [vmem:[#allocation2 + $0x58] sm:$0xff] %vm248, 0.0
          %261 = vst.msk [vmem:[#allocation2 + $0x60] sm:$0xff] %vm248, 0.0
          %262 = vst.msk [vmem:[#allocation2 + $0x68] sm:$0xff] %vm248, 0.0
          %263 = vst.msk [vmem:[#allocation2 + $0x70] sm:$0xff] %vm248, 0.0
          %264 = vst.msk [vmem:[#allocation2 + $0x78] sm:$0xff] %vm248, 0.0
          %265 = vst.msk [vmem:[#allocation2 + $0x80] sm:$0xff] %vm248, 0.0
          %266 = vst.msk [vmem:[#allocation2 + $0x88] sm:$0xff] %vm248, 0.0
          %267 = vst.msk [vmem:[#allocation2 + $0x90] sm:$0xff] %vm248, 0.0
          %268 = vst.msk [vmem:[#allocation2 + $0x98] sm:$0xff] %vm248, 0.0
          %269 = vst.msk [vmem:[#allocation2 + $0xa0] sm:$0xff] %vm248, 0.0
          %270 = vst.msk [vmem:[#allocation2 + $0xa8] sm:$0xff] %vm248, 0.0
          %271 = vst.msk [vmem:[#allocation2 + $0xb0] sm:$0xff] %vm248, 0.0
          %272 = vst.msk [vmem:[#allocation2 + $0xb8] sm:$0xff] %vm248, 0.0
          %273 = vst.msk [vmem:[#allocation2 + $0xc0] sm:$0xff] %vm248, 0.0
          %274 = vst.msk [vmem:[#allocation2 + $0xc8] sm:$0xff] %vm248, 0.0
          %275 = vst.msk [vmem:[#allocation2 + $0xd0] sm:$0xff] %vm248, 0.0
          %276 = vst.msk [vmem:[#allocation2 + $0xd8] sm:$0xff] %vm248, 0.0
          %277 = vst.msk [vmem:[#allocation2 + $0xe0] sm:$0xff] %vm248, 0.0
          %278 = vst.msk [vmem:[#allocation2 + $0xe8] sm:$0xff] %vm248, 0.0
          %279 = vst.msk [vmem:[#allocation2 + $0xf0] sm:$0xff] %vm248, 0.0
          %280 = vst.msk [vmem:[#allocation2 + $0xf8] sm:$0xff] %vm248, 0.0
        $region44: #{tpu_custom_call.1} parent=31 // pred_fallthru
          _
        %v281 = vld [vmem:[%s208] sm:$0xff]
        %v282 = vld [vmem:[%s208 + $0x8] sm:$0xff]
        %v283 = vld [vmem:[%s208 + $0x10] sm:$0xff]
        %v284 = vld [vmem:[%s208 + $0x18] sm:$0xff]
        %v285 = vld [vmem:[%s208 + $0x20] sm:$0xff]
        %v286 = vld [vmem:[%s208 + $0x28] sm:$0xff]
        %v287 = vld [vmem:[%s208 + $0x30] sm:$0xff]
        %v288 = vld [vmem:[%s208 + $0x38] sm:$0xff]
        %v289 = vld [vmem:[%s208 + $0x40] sm:$0xff]
        %v290 = vld [vmem:[%s208 + $0x48] sm:$0xff]
        %v291 = vld [vmem:[%s208 + $0x50] sm:$0xff]
        %v292 = vld [vmem:[%s208 + $0x58] sm:$0xff]
        %v293 = vld [vmem:[%s208 + $0x60] sm:$0xff]
        %v294 = vld [vmem:[%s208 + $0x68] sm:$0xff]
        %v295 = vld [vmem:[%s208 + $0x70] sm:$0xff]
        %v296 = vld [vmem:[%s208 + $0x78] sm:$0xff]
        %v297 = vld [vmem:[%s208 + $0x80] sm:$0xff]
        %v298 = vld [vmem:[%s208 + $0x88] sm:$0xff]
        %v299 = vld [vmem:[%s208 + $0x90] sm:$0xff]
        %v300 = vld [vmem:[%s208 + $0x98] sm:$0xff]
        %v301 = vld [vmem:[%s208 + $0xa0] sm:$0xff]
        %v302 = vld [vmem:[%s208 + $0xa8] sm:$0xff]
        %v303 = vld [vmem:[%s208 + $0xb0] sm:$0xff]
        %v304 = vld [vmem:[%s208 + $0xb8] sm:$0xff]
        %v305 = vld [vmem:[%s208 + $0xc0] sm:$0xff]
        %v306 = vld [vmem:[%s208 + $0xc8] sm:$0xff]
        %v307 = vld [vmem:[%s208 + $0xd0] sm:$0xff]
        %v308 = vld [vmem:[%s208 + $0xd8] sm:$0xff]
        %v309 = vld [vmem:[%s208 + $0xe0] sm:$0xff]
        %v310 = vld [vmem:[%s208 + $0xe8] sm:$0xff]
        %v311 = vld [vmem:[%s208 + $0xf0] sm:$0xff]
        %v312 = vld [vmem:[%s208 + $0xf8] sm:$0xff]
        %v313 = vld [vmem:[%s208 + $0x100] sm:$0xff]
        %v314 = vld [vmem:[%s208 + $0x108] sm:$0xff]
        %v315 = vld [vmem:[%s208 + $0x110] sm:$0xff]
        %v316 = vld [vmem:[%s208 + $0x118] sm:$0xff]
        %v317 = vld [vmem:[%s208 + $0x120] sm:$0xff]
        %v318 = vld [vmem:[%s208 + $0x128] sm:$0xff]
        %v319 = vld [vmem:[%s208 + $0x130] sm:$0xff]
        %v320 = vld [vmem:[%s208 + $0x138] sm:$0xff]
        %v321 = vld [vmem:[%s208 + $0x140] sm:$0xff]
        %v322 = vld [vmem:[%s208 + $0x148] sm:$0xff]
        %v323 = vld [vmem:[%s208 + $0x150] sm:$0xff]
        %v324 = vld [vmem:[%s208 + $0x158] sm:$0xff]
        %v325 = vld [vmem:[%s208 + $0x160] sm:$0xff]
        %v326 = vld [vmem:[%s208 + $0x168] sm:$0xff]
        %v327 = vld [vmem:[%s208 + $0x170] sm:$0xff]
        %v328 = vld [vmem:[%s208 + $0x178] sm:$0xff]
        %v329 = vld [vmem:[%s208 + $0x180] sm:$0xff]
        %v330 = vld [vmem:[%s208 + $0x188] sm:$0xff]
        %v331 = vld [vmem:[%s208 + $0x190] sm:$0xff]
        %v332 = vld [vmem:[%s208 + $0x198] sm:$0xff]
        %v333 = vld [vmem:[%s208 + $0x1a0] sm:$0xff]
        %v334 = vld [vmem:[%s208 + $0x1a8] sm:$0xff]
        %v335 = vld [vmem:[%s208 + $0x1b0] sm:$0xff]
        %v336 = vld [vmem:[%s208 + $0x1b8] sm:$0xff]
        %v337 = vld [vmem:[%s208 + $0x1c0] sm:$0xff]
        %v338 = vld [vmem:[%s208 + $0x1c8] sm:$0xff]
        %v339 = vld [vmem:[%s208 + $0x1d0] sm:$0xff]
        %v340 = vld [vmem:[%s208 + $0x1d8] sm:$0xff]
        %v341 = vld [vmem:[%s208 + $0x1e0] sm:$0xff]
        %v342 = vld [vmem:[%s208 + $0x1e8] sm:$0xff]
        %v343 = vld [vmem:[%s208 + $0x1f0] sm:$0xff]
        %v344 = vld [vmem:[%s208 + $0x1f8] sm:$0xff]
        %v345 = vld [vmem:[%s208 + $0x200] sm:$0xff]
        %v346 = vld [vmem:[%s208 + $0x208] sm:$0xff]
        %v347 = vld [vmem:[%s208 + $0x210] sm:$0xff]
        %v348 = vld [vmem:[%s208 + $0x218] sm:$0xff]
        %v349 = vld [vmem:[%s208 + $0x220] sm:$0xff]
        %v350 = vld [vmem:[%s208 + $0x228] sm:$0xff]
        %v351 = vld [vmem:[%s208 + $0x230] sm:$0xff]
        %v352 = vld [vmem:[%s208 + $0x238] sm:$0xff]
        %v353 = vld [vmem:[%s208 + $0x240] sm:$0xff]
        %v354 = vld [vmem:[%s208 + $0x248] sm:$0xff]
        %v355 = vld [vmem:[%s208 + $0x250] sm:$0xff]
        %v356 = vld [vmem:[%s208 + $0x258] sm:$0xff]
        %v357 = vld [vmem:[%s208 + $0x260] sm:$0xff]
        %v358 = vld [vmem:[%s208 + $0x268] sm:$0xff]
        %v359 = vld [vmem:[%s208 + $0x270] sm:$0xff]
        %v360 = vld [vmem:[%s208 + $0x278] sm:$0xff]
        %v361 = vld [vmem:[%s208 + $0x280] sm:$0xff]
        %v362 = vld [vmem:[%s208 + $0x288] sm:$0xff]
        %v363 = vld [vmem:[%s208 + $0x290] sm:$0xff]
        %v364 = vld [vmem:[%s208 + $0x298] sm:$0xff]
        %v365 = vld [vmem:[%s208 + $0x2a0] sm:$0xff]
        %v366 = vld [vmem:[%s208 + $0x2a8] sm:$0xff]
        %v367 = vld [vmem:[%s208 + $0x2b0] sm:$0xff]
        %v368 = vld [vmem:[%s208 + $0x2b8] sm:$0xff]
        %v369 = vld [vmem:[%s208 + $0x2c0] sm:$0xff]
        %v370 = vld [vmem:[%s208 + $0x2c8] sm:$0xff]
        %v371 = vld [vmem:[%s208 + $0x2d0] sm:$0xff]
        %v372 = vld [vmem:[%s208 + $0x2d8] sm:$0xff]
        %v373 = vld [vmem:[%s208 + $0x2e0] sm:$0xff]
        %v374 = vld [vmem:[%s208 + $0x2e8] sm:$0xff]
        %v375 = vld [vmem:[%s208 + $0x2f0] sm:$0xff]
        %v376 = vld [vmem:[%s208 + $0x2f8] sm:$0xff]
        %v377 = vld [vmem:[%s208 + $0x300] sm:$0xff]
        %v378 = vld [vmem:[%s208 + $0x308] sm:$0xff]
        %v379 = vld [vmem:[%s208 + $0x310] sm:$0xff]
        %v380 = vld [vmem:[%s208 + $0x318] sm:$0xff]
        %v381 = vld [vmem:[%s208 + $0x320] sm:$0xff]
        %v382 = vld [vmem:[%s208 + $0x328] sm:$0xff]
        %v383 = vld [vmem:[%s208 + $0x330] sm:$0xff]
        %v384 = vld [vmem:[%s208 + $0x338] sm:$0xff]
        %v385 = vld [vmem:[%s208 + $0x340] sm:$0xff]
        %v386 = vld [vmem:[%s208 + $0x348] sm:$0xff]
        %v387 = vld [vmem:[%s208 + $0x350] sm:$0xff]
        %v388 = vld [vmem:[%s208 + $0x358] sm:$0xff]
        %v389 = vld [vmem:[%s208 + $0x360] sm:$0xff]
        %v390 = vld [vmem:[%s208 + $0x368] sm:$0xff]
        %v391 = vld [vmem:[%s208 + $0x370] sm:$0xff]
        %v392 = vld [vmem:[%s208 + $0x378] sm:$0xff]
        %v393 = vld [vmem:[%s208 + $0x380] sm:$0xff]
        %v394 = vld [vmem:[%s208 + $0x388] sm:$0xff]
        %v395 = vld [vmem:[%s208 + $0x390] sm:$0xff]
        %v396 = vld [vmem:[%s208 + $0x398] sm:$0xff]
        %v397 = vld [vmem:[%s208 + $0x3a0] sm:$0xff]
        %v398 = vld [vmem:[%s208 + $0x3a8] sm:$0xff]
        %v399 = vld [vmem:[%s208 + $0x3b0] sm:$0xff]
        %v400 = vld [vmem:[%s208 + $0x3b8] sm:$0xff]
        %v401 = vld [vmem:[%s208 + $0x3c0] sm:$0xff]
        %v402 = vld [vmem:[%s208 + $0x3c8] sm:$0xff]
        %v403 = vld [vmem:[%s208 + $0x3d0] sm:$0xff]
        %v404 = vld [vmem:[%s208 + $0x3d8] sm:$0xff]
        %v405 = vld [vmem:[%s208 + $0x3e0] sm:$0xff]
        %v406 = vld [vmem:[%s208 + $0x3e8] sm:$0xff]
        %v407 = vld [vmem:[%s208 + $0x3f0] sm:$0xff]
        %v408 = vld [vmem:[%s208 + $0x3f8] sm:$0xff]
        %v409 = vld [vmem:[%s208 + $0x400] sm:$0xff]
        %v410 = vld [vmem:[%s208 + $0x408] sm:$0xff]
        %v411 = vld [vmem:[%s208 + $0x410] sm:$0xff]
        %v412 = vld [vmem:[%s208 + $0x418] sm:$0xff]
        %v413 = vld [vmem:[%s208 + $0x420] sm:$0xff]
        %v414 = vld [vmem:[%s208 + $0x428] sm:$0xff]
        %v415 = vld [vmem:[%s208 + $0x430] sm:$0xff]
        %v416 = vld [vmem:[%s208 + $0x438] sm:$0xff]
        %v417 = vld [vmem:[%s208 + $0x440] sm:$0xff]
        %v418 = vld [vmem:[%s208 + $0x448] sm:$0xff]
        %v419 = vld [vmem:[%s208 + $0x450] sm:$0xff]
        %v420 = vld [vmem:[%s208 + $0x458] sm:$0xff]
        %v421 = vld [vmem:[%s208 + $0x460] sm:$0xff]
        %v422 = vld [vmem:[%s208 + $0x468] sm:$0xff]
        %v423 = vld [vmem:[%s208 + $0x470] sm:$0xff]
        %v424 = vld [vmem:[%s208 + $0x478] sm:$0xff]
        %v425 = vld [vmem:[%s208 + $0x480] sm:$0xff]
        %v426 = vld [vmem:[%s208 + $0x488] sm:$0xff]
        %v427 = vld [vmem:[%s208 + $0x490] sm:$0xff]
        %v428 = vld [vmem:[%s208 + $0x498] sm:$0xff]
        %v429 = vld [vmem:[%s208 + $0x4a0] sm:$0xff]
        %v430 = vld [vmem:[%s208 + $0x4a8] sm:$0xff]
        %v431 = vld [vmem:[%s208 + $0x4b0] sm:$0xff]
        %v432 = vld [vmem:[%s208 + $0x4b8] sm:$0xff]
        %v433 = vld [vmem:[%s208 + $0x4c0] sm:$0xff]
        %v434 = vld [vmem:[%s208 + $0x4c8] sm:$0xff]
        %v435 = vld [vmem:[%s208 + $0x4d0] sm:$0xff]
        %v436 = vld [vmem:[%s208 + $0x4d8] sm:$0xff]
        %v437 = vld [vmem:[%s208 + $0x4e0] sm:$0xff]
        %v438 = vld [vmem:[%s208 + $0x4e8] sm:$0xff]
        %v439 = vld [vmem:[%s208 + $0x4f0] sm:$0xff]
        %v440 = vld [vmem:[%s208 + $0x4f8] sm:$0xff]
        %v441 = vld [vmem:[%s208 + $0x500] sm:$0xff]
        %v442 = vld [vmem:[%s208 + $0x508] sm:$0xff]
        %v443 = vld [vmem:[%s208 + $0x510] sm:$0xff]
        %v444 = vld [vmem:[%s208 + $0x518] sm:$0xff]
        %v445 = vld [vmem:[%s208 + $0x520] sm:$0xff]
        %v446 = vld [vmem:[%s208 + $0x528] sm:$0xff]
        %v447 = vld [vmem:[%s208 + $0x530] sm:$0xff]
        %v448 = vld [vmem:[%s208 + $0x538] sm:$0xff]
        %v449 = vld [vmem:[%s208 + $0x540] sm:$0xff]
        %v450 = vld [vmem:[%s208 + $0x548] sm:$0xff]
        %v451 = vld [vmem:[%s208 + $0x550] sm:$0xff]
        %v452 = vld [vmem:[%s208 + $0x558] sm:$0xff]
        %v453 = vld [vmem:[%s208 + $0x560] sm:$0xff]
        %v454 = vld [vmem:[%s208 + $0x568] sm:$0xff]
        %v455 = vld [vmem:[%s208 + $0x570] sm:$0xff]
        %v456 = vld [vmem:[%s208 + $0x578] sm:$0xff]
        %v457 = vld [vmem:[%s208 + $0x580] sm:$0xff]
        %v458 = vld [vmem:[%s208 + $0x588] sm:$0xff]
        %v459 = vld [vmem:[%s208 + $0x590] sm:$0xff]
        %v460 = vld [vmem:[%s208 + $0x598] sm:$0xff]
        %v461 = vld [vmem:[%s208 + $0x5a0] sm:$0xff]
        %v462 = vld [vmem:[%s208 + $0x5a8] sm:$0xff]
        %v463 = vld [vmem:[%s208 + $0x5b0] sm:$0xff]
        %v464 = vld [vmem:[%s208 + $0x5b8] sm:$0xff]
        %v465 = vld [vmem:[%s208 + $0x5c0] sm:$0xff]
        %v466 = vld [vmem:[%s208 + $0x5c8] sm:$0xff]
        %v467 = vld [vmem:[%s208 + $0x5d0] sm:$0xff]
        %v468 = vld [vmem:[%s208 + $0x5d8] sm:$0xff]
        %v469 = vld [vmem:[%s208 + $0x5e0] sm:$0xff]
        %v470 = vld [vmem:[%s208 + $0x5e8] sm:$0xff]
        %v471 = vld [vmem:[%s208 + $0x5f0] sm:$0xff]
        %v472 = vld [vmem:[%s208 + $0x5f8] sm:$0xff]
        %v473 = vld [vmem:[#allocation7] sm:$0x3f]
        %v475 = vlaneseq
        %v476 = vshrl.u32 %v475, 7
        %v477 = vsub.s32 0, %v476
        %v478 = vrot.slane %v473, %v477
        %v479 = vlaneseq
        %v480 = vshrl.u32 %v479, 7
        %v481 = vsub.s32 1, %v480
        %v482 = vrot.slane %v473, %v481
        %v483 = vlaneseq
        %v484 = vshrl.u32 %v483, 7
        %v485 = vsub.s32 2, %v484
        %v486 = vrot.slane %v473, %v485
        %v487 = vlaneseq
        %v488 = vshrl.u32 %v487, 7
        %v489 = vsub.s32 3, %v488
        %v490 = vrot.slane %v473, %v489
        %v491 = vlaneseq
        %v492 = vshrl.u32 %v491, 7
        %v493 = vsub.s32 4, %v492
        %v494 = vrot.slane %v473, %v493
        %v495 = vlaneseq
        %v496 = vshrl.u32 %v495, 7
        %v497 = vsub.s32 5, %v496
        %v498 = vrot.slane %v473, %v497
        %v505 = vmul.f32 %v281, %v478
        %v506 = vmul.f32 %v282, %v482
        %v507 = vmul.f32 %v283, %v486
        %v508 = vmul.f32 %v284, %v490
        %v509 = vmul.f32 %v285, %v494
        %v510 = vmul.f32 %v286, %v498
        %v511 = vmul.f32 %v287, %v478
        %v512 = vmul.f32 %v288, %v482
        %v513 = vmul.f32 %v289, %v486
        %v514 = vmul.f32 %v290, %v490
        %v515 = vmul.f32 %v291, %v494
        %v516 = vmul.f32 %v292, %v498
        %v517 = vmul.f32 %v293, %v478
        %v518 = vmul.f32 %v294, %v482
        %v519 = vmul.f32 %v295, %v486
        %v520 = vmul.f32 %v296, %v490
        %v521 = vmul.f32 %v297, %v494
        %v522 = vmul.f32 %v298, %v498
        %v523 = vmul.f32 %v299, %v478
        %v524 = vmul.f32 %v300, %v482
        %v525 = vmul.f32 %v301, %v486
        %v526 = vmul.f32 %v302, %v490
        %v527 = vmul.f32 %v303, %v494
        %v528 = vmul.f32 %v304, %v498
        %v529 = vmul.f32 %v305, %v478
        %v530 = vmul.f32 %v306, %v482
        %v531 = vmul.f32 %v307, %v486
        %v532 = vmul.f32 %v308, %v490
        %v533 = vmul.f32 %v309, %v494
        %v534 = vmul.f32 %v310, %v498
        %v535 = vmul.f32 %v311, %v478
        %v536 = vmul.f32 %v312, %v482
        %v537 = vmul.f32 %v313, %v486
        %v538 = vmul.f32 %v314, %v490
        %v539 = vmul.f32 %v315, %v494
        %v540 = vmul.f32 %v316, %v498
        %v541 = vmul.f32 %v317, %v478
        %v542 = vmul.f32 %v318, %v482
        %v543 = vmul.f32 %v319, %v486
        %v544 = vmul.f32 %v320, %v490
        %v545 = vmul.f32 %v321, %v494
        %v546 = vmul.f32 %v322, %v498
        %v547 = vmul.f32 %v323, %v478
        %v548 = vmul.f32 %v324, %v482
        %v549 = vmul.f32 %v325, %v486
        %v550 = vmul.f32 %v326, %v490
        %v551 = vmul.f32 %v327, %v494
        %v552 = vmul.f32 %v328, %v498
        %v553 = vmul.f32 %v329, %v478
        %v554 = vmul.f32 %v330, %v482
        %v555 = vmul.f32 %v331, %v486
        %v556 = vmul.f32 %v332, %v490
        %v557 = vmul.f32 %v333, %v494
        %v558 = vmul.f32 %v334, %v498
        %v559 = vmul.f32 %v335, %v478
        %v560 = vmul.f32 %v336, %v482
        %v561 = vmul.f32 %v337, %v486
        %v562 = vmul.f32 %v338, %v490
        %v563 = vmul.f32 %v339, %v494
        %v564 = vmul.f32 %v340, %v498
        %v565 = vmul.f32 %v341, %v478
        %v566 = vmul.f32 %v342, %v482
        %v567 = vmul.f32 %v343, %v486
        %v568 = vmul.f32 %v344, %v490
        %v569 = vmul.f32 %v345, %v494
        %v570 = vmul.f32 %v346, %v498
        %v571 = vmul.f32 %v347, %v478
        %v572 = vmul.f32 %v348, %v482
        %v573 = vmul.f32 %v349, %v486
        %v574 = vmul.f32 %v350, %v490
        %v575 = vmul.f32 %v351, %v494
        %v576 = vmul.f32 %v352, %v498
        %v577 = vmul.f32 %v353, %v478
        %v578 = vmul.f32 %v354, %v482
        %v579 = vmul.f32 %v355, %v486
        %v580 = vmul.f32 %v356, %v490
        %v581 = vmul.f32 %v357, %v494
        %v582 = vmul.f32 %v358, %v498
        %v583 = vmul.f32 %v359, %v478
        %v584 = vmul.f32 %v360, %v482
        %v585 = vmul.f32 %v361, %v486
        %v586 = vmul.f32 %v362, %v490
        %v587 = vmul.f32 %v363, %v494
        %v588 = vmul.f32 %v364, %v498
        %v589 = vmul.f32 %v365, %v478
        %v590 = vmul.f32 %v366, %v482
        %v591 = vmul.f32 %v367, %v486
        %v592 = vmul.f32 %v368, %v490
        %v593 = vmul.f32 %v369, %v494
        %v594 = vmul.f32 %v370, %v498
        %v595 = vmul.f32 %v371, %v478
        %v596 = vmul.f32 %v372, %v482
        %v597 = vmul.f32 %v373, %v486
        %v598 = vmul.f32 %v374, %v490
        %v599 = vmul.f32 %v375, %v494
        %v600 = vmul.f32 %v376, %v498
        %v601 = vmul.f32 %v377, %v478
        %v602 = vmul.f32 %v378, %v482
        %v603 = vmul.f32 %v379, %v486
        %v604 = vmul.f32 %v380, %v490
        %v605 = vmul.f32 %v381, %v494
        %v606 = vmul.f32 %v382, %v498
        %v607 = vmul.f32 %v383, %v478
        %v608 = vmul.f32 %v384, %v482
        %v609 = vmul.f32 %v385, %v486
        %v610 = vmul.f32 %v386, %v490
        %v611 = vmul.f32 %v387, %v494
        %v612 = vmul.f32 %v388, %v498
        %v613 = vmul.f32 %v389, %v478
        %v614 = vmul.f32 %v390, %v482
        %v615 = vmul.f32 %v391, %v486
        %v616 = vmul.f32 %v392, %v490
        %v617 = vmul.f32 %v393, %v494
        %v618 = vmul.f32 %v394, %v498
        %v619 = vmul.f32 %v395, %v478
        %v620 = vmul.f32 %v396, %v482
        %v621 = vmul.f32 %v397, %v486
        %v622 = vmul.f32 %v398, %v490
        %v623 = vmul.f32 %v399, %v494
        %v624 = vmul.f32 %v400, %v498
        %v625 = vmul.f32 %v401, %v478
        %v626 = vmul.f32 %v402, %v482
        %v627 = vmul.f32 %v403, %v486
        %v628 = vmul.f32 %v404, %v490
        %v629 = vmul.f32 %v405, %v494
        %v630 = vmul.f32 %v406, %v498
        %v631 = vmul.f32 %v407, %v478
        %v632 = vmul.f32 %v408, %v482
        %v633 = vmul.f32 %v409, %v486
        %v634 = vmul.f32 %v410, %v490
        %v635 = vmul.f32 %v411, %v494
        %v636 = vmul.f32 %v412, %v498
        %v637 = vmul.f32 %v413, %v478
        %v638 = vmul.f32 %v414, %v482
        %v639 = vmul.f32 %v415, %v486
        %v640 = vmul.f32 %v416, %v490
        %v641 = vmul.f32 %v417, %v494
        %v642 = vmul.f32 %v418, %v498
        %v643 = vmul.f32 %v419, %v478
        %v644 = vmul.f32 %v420, %v482
        %v645 = vmul.f32 %v421, %v486
        %v646 = vmul.f32 %v422, %v490
        %v647 = vmul.f32 %v423, %v494
        %v648 = vmul.f32 %v424, %v498
        %v649 = vmul.f32 %v425, %v478
        %v650 = vmul.f32 %v426, %v482
        %v651 = vmul.f32 %v427, %v486
        %v652 = vmul.f32 %v428, %v490
        %v653 = vmul.f32 %v429, %v494
        %v654 = vmul.f32 %v430, %v498
        %v655 = vmul.f32 %v431, %v478
        %v656 = vmul.f32 %v432, %v482
        %v657 = vmul.f32 %v433, %v486
        %v658 = vmul.f32 %v434, %v490
        %v659 = vmul.f32 %v435, %v494
        %v660 = vmul.f32 %v436, %v498
        %v661 = vmul.f32 %v437, %v478
        %v662 = vmul.f32 %v438, %v482
        %v663 = vmul.f32 %v439, %v486
        %v664 = vmul.f32 %v440, %v490
        %v665 = vmul.f32 %v441, %v494
        %v666 = vmul.f32 %v442, %v498
        %v667 = vmul.f32 %v443, %v478
        %v668 = vmul.f32 %v444, %v482
        %v669 = vmul.f32 %v445, %v486
        %v670 = vmul.f32 %v446, %v490
        %v671 = vmul.f32 %v447, %v494
        %v672 = vmul.f32 %v448, %v498
        %v673 = vmul.f32 %v449, %v478
        %v674 = vmul.f32 %v450, %v482
        %v675 = vmul.f32 %v451, %v486
        %v676 = vmul.f32 %v452, %v490
        %v677 = vmul.f32 %v453, %v494
        %v678 = vmul.f32 %v454, %v498
        %v679 = vmul.f32 %v455, %v478
        %v680 = vmul.f32 %v456, %v482
        %v681 = vmul.f32 %v457, %v486
        %v682 = vmul.f32 %v458, %v490
        %v683 = vmul.f32 %v459, %v494
        %v684 = vmul.f32 %v460, %v498
        %v685 = vmul.f32 %v461, %v478
        %v686 = vmul.f32 %v462, %v482
        %v687 = vmul.f32 %v463, %v486
        %v688 = vmul.f32 %v464, %v490
        %v689 = vmul.f32 %v465, %v494
        %v690 = vmul.f32 %v466, %v498
        %v691 = vmul.f32 %v467, %v478
        %v692 = vmul.f32 %v468, %v482
        %v693 = vmul.f32 %v469, %v486
        %v694 = vmul.f32 %v470, %v490
        %v695 = vmul.f32 %v471, %v494
        %v696 = vmul.f32 %v472, %v498
        %v697 = vadd.f32 %v505, %v506
        %v698 = vadd.f32 %v697, %v507
        %v699 = vadd.f32 %v698, %v508
        %v700 = vadd.f32 %v699, %v509
        %v701 = vadd.f32 %v700, %v510
        %702 = vadd.xlane.f32.xlu0 %v701
        %v703 = vpop.xlane.xlu0 %702
        %v704 = vadd.f32 %v511, %v512
        %v705 = vadd.f32 %v704, %v513
        %v706 = vadd.f32 %v705, %v514
        %v707 = vadd.f32 %v706, %v515
        %v708 = vadd.f32 %v707, %v516
        %709 = vadd.xlane.f32.xlu0 %v708
        %v710 = vpop.xlane.xlu0 %709
        %v711 = vadd.f32 %v517, %v518
        %v712 = vadd.f32 %v711, %v519
        %v713 = vadd.f32 %v712, %v520
        %v714 = vadd.f32 %v713, %v521
        %v715 = vadd.f32 %v714, %v522
        %716 = vadd.xlane.f32.xlu0 %v715
        %v717 = vpop.xlane.xlu0 %716
        %v718 = vadd.f32 %v523, %v524
        %v719 = vadd.f32 %v718, %v525
        %v720 = vadd.f32 %v719, %v526
        %v721 = vadd.f32 %v720, %v527
        %v722 = vadd.f32 %v721, %v528
        %723 = vadd.xlane.f32.xlu0 %v722
        %v724 = vpop.xlane.xlu0 %723
        %v725 = vadd.f32 %v529, %v530
        %v726 = vadd.f32 %v725, %v531
        %v727 = vadd.f32 %v726, %v532
        %v728 = vadd.f32 %v727, %v533
        %v729 = vadd.f32 %v728, %v534
        %730 = vadd.xlane.f32.xlu0 %v729
        %v731 = vpop.xlane.xlu0 %730
        %v732 = vadd.f32 %v535, %v536
        %v733 = vadd.f32 %v732, %v537
        %v734 = vadd.f32 %v733, %v538
        %v735 = vadd.f32 %v734, %v539
        %v736 = vadd.f32 %v735, %v540
        %737 = vadd.xlane.f32.xlu0 %v736
        %v738 = vpop.xlane.xlu0 %737
        %v739 = vadd.f32 %v541, %v542
        %v740 = vadd.f32 %v739, %v543
        %v741 = vadd.f32 %v740, %v544
        %v742 = vadd.f32 %v741, %v545
        %v743 = vadd.f32 %v742, %v546
        %744 = vadd.xlane.f32.xlu0 %v743
        %v745 = vpop.xlane.xlu0 %744
        %v746 = vadd.f32 %v547, %v548
        %v747 = vadd.f32 %v746, %v549
        %v748 = vadd.f32 %v747, %v550
        %v749 = vadd.f32 %v748, %v551
        %v750 = vadd.f32 %v749, %v552
        %751 = vadd.xlane.f32.xlu0 %v750
        %v752 = vpop.xlane.xlu0 %751
        %v753 = vadd.f32 %v553, %v554
        %v754 = vadd.f32 %v753, %v555
        %v755 = vadd.f32 %v754, %v556
        %v756 = vadd.f32 %v755, %v557
        %v757 = vadd.f32 %v756, %v558
        %758 = vadd.xlane.f32.xlu0 %v757
        %v759 = vpop.xlane.xlu0 %758
        %v760 = vadd.f32 %v559, %v560
        %v761 = vadd.f32 %v760, %v561
        %v762 = vadd.f32 %v761, %v562
        %v763 = vadd.f32 %v762, %v563
        %v764 = vadd.f32 %v763, %v564
        %765 = vadd.xlane.f32.xlu0 %v764
        %v766 = vpop.xlane.xlu0 %765
        %v767 = vadd.f32 %v565, %v566
        %v768 = vadd.f32 %v767, %v567
        %v769 = vadd.f32 %v768, %v568
        %v770 = vadd.f32 %v769, %v569
        %v771 = vadd.f32 %v770, %v570
        %772 = vadd.xlane.f32.xlu0 %v771
        %v773 = vpop.xlane.xlu0 %772
        %v774 = vadd.f32 %v571, %v572
        %v775 = vadd.f32 %v774, %v573
        %v776 = vadd.f32 %v775, %v574
        %v777 = vadd.f32 %v776, %v575
        %v778 = vadd.f32 %v777, %v576
        %779 = vadd.xlane.f32.xlu0 %v778
        %v780 = vpop.xlane.xlu0 %779
        %v781 = vadd.f32 %v577, %v578
        %v782 = vadd.f32 %v781, %v579
        %v783 = vadd.f32 %v782, %v580
        %v784 = vadd.f32 %v783, %v581
        %v785 = vadd.f32 %v784, %v582
        %786 = vadd.xlane.f32.xlu0 %v785
        %v787 = vpop.xlane.xlu0 %786
        %v788 = vadd.f32 %v583, %v584
        %v789 = vadd.f32 %v788, %v585
        %v790 = vadd.f32 %v789, %v586
        %v791 = vadd.f32 %v790, %v587
        %v792 = vadd.f32 %v791, %v588
        %793 = vadd.xlane.f32.xlu0 %v792
        %v794 = vpop.xlane.xlu0 %793
        %v795 = vadd.f32 %v589, %v590
        %v796 = vadd.f32 %v795, %v591
        %v797 = vadd.f32 %v796, %v592
        %v798 = vadd.f32 %v797, %v593
        %v799 = vadd.f32 %v798, %v594
        %800 = vadd.xlane.f32.xlu0 %v799
        %v801 = vpop.xlane.xlu0 %800
        %v802 = vadd.f32 %v595, %v596
        %v803 = vadd.f32 %v802, %v597
        %v804 = vadd.f32 %v803, %v598
        %v805 = vadd.f32 %v804, %v599
        %v806 = vadd.f32 %v805, %v600
        %807 = vadd.xlane.f32.xlu0 %v806
        %v808 = vpop.xlane.xlu0 %807
        %v809 = vadd.f32 %v601, %v602
        %v810 = vadd.f32 %v809, %v603
        %v811 = vadd.f32 %v810, %v604
        %v812 = vadd.f32 %v811, %v605
        %v813 = vadd.f32 %v812, %v606
        %814 = vadd.xlane.f32.xlu0 %v813
        %v815 = vpop.xlane.xlu0 %814
        %v816 = vadd.f32 %v607, %v608
        %v817 = vadd.f32 %v816, %v609
        %v818 = vadd.f32 %v817, %v610
        %v819 = vadd.f32 %v818, %v611
        %v820 = vadd.f32 %v819, %v612
        %821 = vadd.xlane.f32.xlu0 %v820
        %v822 = vpop.xlane.xlu0 %821
        %v823 = vadd.f32 %v613, %v614
        %v824 = vadd.f32 %v823, %v615
        %v825 = vadd.f32 %v824, %v616
        %v826 = vadd.f32 %v825, %v617
        %v827 = vadd.f32 %v826, %v618
        %828 = vadd.xlane.f32.xlu0 %v827
        %v829 = vpop.xlane.xlu0 %828
        %v830 = vadd.f32 %v619, %v620
        %v831 = vadd.f32 %v830, %v621
        %v832 = vadd.f32 %v831, %v622
        %v833 = vadd.f32 %v832, %v623
        %v834 = vadd.f32 %v833, %v624
        %835 = vadd.xlane.f32.xlu0 %v834
        %v836 = vpop.xlane.xlu0 %835
        %v837 = vadd.f32 %v625, %v626
        %v838 = vadd.f32 %v837, %v627
        %v839 = vadd.f32 %v838, %v628
        %v840 = vadd.f32 %v839, %v629
        %v841 = vadd.f32 %v840, %v630
        %842 = vadd.xlane.f32.xlu0 %v841
        %v843 = vpop.xlane.xlu0 %842
        %v844 = vadd.f32 %v631, %v632
        %v845 = vadd.f32 %v844, %v633
        %v846 = vadd.f32 %v845, %v634
        %v847 = vadd.f32 %v846, %v635
        %v848 = vadd.f32 %v847, %v636
        %849 = vadd.xlane.f32.xlu0 %v848
        %v850 = vpop.xlane.xlu0 %849
        %v851 = vadd.f32 %v637, %v638
        %v852 = vadd.f32 %v851, %v639
        %v853 = vadd.f32 %v852, %v640
        %v854 = vadd.f32 %v853, %v641
        %v855 = vadd.f32 %v854, %v642
        %856 = vadd.xlane.f32.xlu0 %v855
        %v857 = vpop.xlane.xlu0 %856
        %v858 = vadd.f32 %v643, %v644
        %v859 = vadd.f32 %v858, %v645
        %v860 = vadd.f32 %v859, %v646
        %v861 = vadd.f32 %v860, %v647
        %v862 = vadd.f32 %v861, %v648
        %863 = vadd.xlane.f32.xlu0 %v862
        %v864 = vpop.xlane.xlu0 %863
        %v865 = vadd.f32 %v649, %v650
        %v866 = vadd.f32 %v865, %v651
        %v867 = vadd.f32 %v866, %v652
        %v868 = vadd.f32 %v867, %v653
        %v869 = vadd.f32 %v868, %v654
        %870 = vadd.xlane.f32.xlu0 %v869
        %v871 = vpop.xlane.xlu0 %870
        %v872 = vadd.f32 %v655, %v656
        %v873 = vadd.f32 %v872, %v657
        %v874 = vadd.f32 %v873, %v658
        %v875 = vadd.f32 %v874, %v659
        %v876 = vadd.f32 %v875, %v660
        %877 = vadd.xlane.f32.xlu0 %v876
        %v878 = vpop.xlane.xlu0 %877
        %v879 = vadd.f32 %v661, %v662
        %v880 = vadd.f32 %v879, %v663
        %v881 = vadd.f32 %v880, %v664
        %v882 = vadd.f32 %v881, %v665
        %v883 = vadd.f32 %v882, %v666
        %884 = vadd.xlane.f32.xlu0 %v883
        %v885 = vpop.xlane.xlu0 %884
        %v886 = vadd.f32 %v667, %v668
        %v887 = vadd.f32 %v886, %v669
        %v888 = vadd.f32 %v887, %v670
        %v889 = vadd.f32 %v888, %v671
        %v890 = vadd.f32 %v889, %v672
        %891 = vadd.xlane.f32.xlu0 %v890
        %v892 = vpop.xlane.xlu0 %891
        %v893 = vadd.f32 %v673, %v674
        %v894 = vadd.f32 %v893, %v675
        %v895 = vadd.f32 %v894, %v676
        %v896 = vadd.f32 %v895, %v677
        %v897 = vadd.f32 %v896, %v678
        %898 = vadd.xlane.f32.xlu0 %v897
        %v899 = vpop.xlane.xlu0 %898
        %v900 = vadd.f32 %v679, %v680
        %v901 = vadd.f32 %v900, %v681
        %v902 = vadd.f32 %v901, %v682
        %v903 = vadd.f32 %v902, %v683
        %v904 = vadd.f32 %v903, %v684
        %905 = vadd.xlane.f32.xlu0 %v904
        %v906 = vpop.xlane.xlu0 %905
        %v907 = vadd.f32 %v685, %v686
        %v908 = vadd.f32 %v907, %v687
        %v909 = vadd.f32 %v908, %v688
        %v910 = vadd.f32 %v909, %v689
        %v911 = vadd.f32 %v910, %v690
        %912 = vadd.xlane.f32.xlu0 %v911
        %v913 = vpop.xlane.xlu0 %912
        %v914 = vadd.f32 %v691, %v692
        %v915 = vadd.f32 %v914, %v693
        %v916 = vadd.f32 %v915, %v694
        %v917 = vadd.f32 %v916, %v695
        %v918 = vadd.f32 %v917, %v696
        %919 = vadd.xlane.f32.xlu0 %v918
        %v920 = vpop.xlane.xlu0 %919
        %v921 = vld [vmem:[#allocation2] sm:$0xff]
        %v922 = vld [vmem:[#allocation2 + $0x8] sm:$0xff]
        %v923 = vld [vmem:[#allocation2 + $0x10] sm:$0xff]
        %v924 = vld [vmem:[#allocation2 + $0x18] sm:$0xff]
        %v925 = vld [vmem:[#allocation2 + $0x20] sm:$0xff]
        %v926 = vld [vmem:[#allocation2 + $0x28] sm:$0xff]
        %v927 = vld [vmem:[#allocation2 + $0x30] sm:$0xff]
        %v928 = vld [vmem:[#allocation2 + $0x38] sm:$0xff]
        %v929 = vld [vmem:[#allocation2 + $0x40] sm:$0xff]
        %v930 = vld [vmem:[#allocation2 + $0x48] sm:$0xff]
        %v931 = vld [vmem:[#allocation2 + $0x50] sm:$0xff]
        %v932 = vld [vmem:[#allocation2 + $0x58] sm:$0xff]
        %v933 = vld [vmem:[#allocation2 + $0x60] sm:$0xff]
        %v934 = vld [vmem:[#allocation2 + $0x68] sm:$0xff]
        %v935 = vld [vmem:[#allocation2 + $0x70] sm:$0xff]
        %v936 = vld [vmem:[#allocation2 + $0x78] sm:$0xff]
        %v937 = vld [vmem:[#allocation2 + $0x80] sm:$0xff]
        %v938 = vld [vmem:[#allocation2 + $0x88] sm:$0xff]
        %v939 = vld [vmem:[#allocation2 + $0x90] sm:$0xff]
        %v940 = vld [vmem:[#allocation2 + $0x98] sm:$0xff]
        %v941 = vld [vmem:[#allocation2 + $0xa0] sm:$0xff]
        %v942 = vld [vmem:[#allocation2 + $0xa8] sm:$0xff]
        %v943 = vld [vmem:[#allocation2 + $0xb0] sm:$0xff]
        %v944 = vld [vmem:[#allocation2 + $0xb8] sm:$0xff]
        %v945 = vld [vmem:[#allocation2 + $0xc0] sm:$0xff]
        %v946 = vld [vmem:[#allocation2 + $0xc8] sm:$0xff]
        %v947 = vld [vmem:[#allocation2 + $0xd0] sm:$0xff]
        %v948 = vld [vmem:[#allocation2 + $0xd8] sm:$0xff]
        %v949 = vld [vmem:[#allocation2 + $0xe0] sm:$0xff]
        %v950 = vld [vmem:[#allocation2 + $0xe8] sm:$0xff]
        %v951 = vld [vmem:[#allocation2 + $0xf0] sm:$0xff]
        %v952 = vld [vmem:[#allocation2 + $0xf8] sm:$0xff]
        %v953 = vadd.f32 %v921, %v703
        %v954 = vadd.f32 %v922, %v710
        %v955 = vadd.f32 %v923, %v717
        %v956 = vadd.f32 %v924, %v724
        %v957 = vadd.f32 %v925, %v731
        %v958 = vadd.f32 %v926, %v738
        %v959 = vadd.f32 %v927, %v745
        %v960 = vadd.f32 %v928, %v752
        %v961 = vadd.f32 %v929, %v759
        %v962 = vadd.f32 %v930, %v766
        %v963 = vadd.f32 %v931, %v773
        %v964 = vadd.f32 %v932, %v780
        %v965 = vadd.f32 %v933, %v787
        %v966 = vadd.f32 %v934, %v794
        %v967 = vadd.f32 %v935, %v801
        %v968 = vadd.f32 %v936, %v808
        %v969 = vadd.f32 %v937, %v815
        %v970 = vadd.f32 %v938, %v822
        %v971 = vadd.f32 %v939, %v829
        %v972 = vadd.f32 %v940, %v836
        %v973 = vadd.f32 %v941, %v843
        %v974 = vadd.f32 %v942, %v850
        %v975 = vadd.f32 %v943, %v857
        %v976 = vadd.f32 %v944, %v864
        %v977 = vadd.f32 %v945, %v871
        %v978 = vadd.f32 %v946, %v878
        %v979 = vadd.f32 %v947, %v885
        %v980 = vadd.f32 %v948, %v892
        %v981 = vadd.f32 %v949, %v899
        %v982 = vadd.f32 %v950, %v906
        %v983 = vadd.f32 %v951, %v913
        %v984 = vadd.f32 %v952, %v920
        %vm985 = vcmask 7168
        %986 = vst.msk [vmem:[#allocation2] sm:$0xff] %vm985, %v953
        %987 = vst.msk [vmem:[#allocation2 + $0x8] sm:$0xff] %vm985, %v954
        %988 = vst.msk [vmem:[#allocation2 + $0x10] sm:$0xff] %vm985, %v955
        %989 = vst.msk [vmem:[#allocation2 + $0x18] sm:$0xff] %vm985, %v956
        %990 = vst.msk [vmem:[#allocation2 + $0x20] sm:$0xff] %vm985, %v957
        %991 = vst.msk [vmem:[#allocation2 + $0x28] sm:$0xff] %vm985, %v958
        %992 = vst.msk [vmem:[#allocation2 + $0x30] sm:$0xff] %vm985, %v959
        %993 = vst.msk [vmem:[#allocation2 + $0x38] sm:$0xff] %vm985, %v960
        %994 = vst.msk [vmem:[#allocation2 + $0x40] sm:$0xff] %vm985, %v961
        %995 = vst.msk [vmem:[#allocation2 + $0x48] sm:$0xff] %vm985, %v962
        %996 = vst.msk [vmem:[#allocation2 + $0x50] sm:$0xff] %vm985, %v963
        %997 = vst.msk [vmem:[#allocation2 + $0x58] sm:$0xff] %vm985, %v964
        %998 = vst.msk [vmem:[#allocation2 + $0x60] sm:$0xff] %vm985, %v965
        %999 = vst.msk [vmem:[#allocation2 + $0x68] sm:$0xff] %vm985, %v966
        %1000 = vst.msk [vmem:[#allocation2 + $0x70] sm:$0xff] %vm985, %v967
        %1001 = vst.msk [vmem:[#allocation2 + $0x78] sm:$0xff] %vm985, %v968
        %1002 = vst.msk [vmem:[#allocation2 + $0x80] sm:$0xff] %vm985, %v969
        %1003 = vst.msk [vmem:[#allocation2 + $0x88] sm:$0xff] %vm985, %v970
        %1004 = vst.msk [vmem:[#allocation2 + $0x90] sm:$0xff] %vm985, %v971
        %1005 = vst.msk [vmem:[#allocation2 + $0x98] sm:$0xff] %vm985, %v972
        %1006 = vst.msk [vmem:[#allocation2 + $0xa0] sm:$0xff] %vm985, %v973
        %1007 = vst.msk [vmem:[#allocation2 + $0xa8] sm:$0xff] %vm985, %v974
        %1008 = vst.msk [vmem:[#allocation2 + $0xb0] sm:$0xff] %vm985, %v975
        %1009 = vst.msk [vmem:[#allocation2 + $0xb8] sm:$0xff] %vm985, %v976
        %1010 = vst.msk [vmem:[#allocation2 + $0xc0] sm:$0xff] %vm985, %v977
        %1011 = vst.msk [vmem:[#allocation2 + $0xc8] sm:$0xff] %vm985, %v978
        %1012 = vst.msk [vmem:[#allocation2 + $0xd0] sm:$0xff] %vm985, %v979
        %1013 = vst.msk [vmem:[#allocation2 + $0xd8] sm:$0xff] %vm985, %v980
        %1014 = vst.msk [vmem:[#allocation2 + $0xe0] sm:$0xff] %vm985, %v981
        %1015 = vst.msk [vmem:[#allocation2 + $0xe8] sm:$0xff] %vm985, %v982
        %1016 = vst.msk [vmem:[#allocation2 + $0xf0] sm:$0xff] %vm985, %v983
        %1017 = vst.msk [vmem:[#allocation2 + $0xf8] sm:$0xff] %vm985, %v984
        // Predicated region
        $region45: #{tpu_custom_call.1} parent=31 // pred_check
          %p1018 = pneg %p244
        $region46: #{tpu_custom_call.1} parent=31 // pred_check_branch
          %1020 = sbr.rel (%p1018) target = $region48
        $region47: #{tpu_custom_call.1} parent=31 // pred_region
          %v1021 = vld [vmem:[#allocation2] sm:$0xff]
          %v1022 = vld [vmem:[#allocation2 + $0x8] sm:$0xff]
          %v1023 = vld [vmem:[#allocation2 + $0x10] sm:$0xff]
          %v1024 = vld [vmem:[#allocation2 + $0x18] sm:$0xff]
          %v1025 = vld [vmem:[#allocation2 + $0x20] sm:$0xff]
          %v1026 = vld [vmem:[#allocation2 + $0x28] sm:$0xff]
          %v1027 = vld [vmem:[#allocation2 + $0x30] sm:$0xff]
          %v1028 = vld [vmem:[#allocation2 + $0x38] sm:$0xff]
          %v1029 = vld [vmem:[#allocation2 + $0x40] sm:$0xff]
          %v1030 = vld [vmem:[#allocation2 + $0x48] sm:$0xff]
          %v1031 = vld [vmem:[#allocation2 + $0x50] sm:$0xff]
          %v1032 = vld [vmem:[#allocation2 + $0x58] sm:$0xff]
          %v1033 = vld [vmem:[#allocation2 + $0x60] sm:$0xff]
          %v1034 = vld [vmem:[#allocation2 + $0x68] sm:$0xff]
          %v1035 = vld [vmem:[#allocation2 + $0x70] sm:$0xff]
          %v1036 = vld [vmem:[#allocation2 + $0x78] sm:$0xff]
          %v1037 = vld [vmem:[#allocation2 + $0x80] sm:$0xff]
          %v1038 = vld [vmem:[#allocation2 + $0x88] sm:$0xff]
          %v1039 = vld [vmem:[#allocation2 + $0x90] sm:$0xff]
          %v1040 = vld [vmem:[#allocation2 + $0x98] sm:$0xff]
          %v1041 = vld [vmem:[#allocation2 + $0xa0] sm:$0xff]
          %v1042 = vld [vmem:[#allocation2 + $0xa8] sm:$0xff]
          %v1043 = vld [vmem:[#allocation2 + $0xb0] sm:$0xff]
          %v1044 = vld [vmem:[#allocation2 + $0xb8] sm:$0xff]
          %v1045 = vld [vmem:[#allocation2 + $0xc0] sm:$0xff]
          %v1046 = vld [vmem:[#allocation2 + $0xc8] sm:$0xff]
          %v1047 = vld [vmem:[#allocation2 + $0xd0] sm:$0xff]
          %v1048 = vld [vmem:[#allocation2 + $0xd8] sm:$0xff]
          %v1049 = vld [vmem:[#allocation2 + $0xe0] sm:$0xff]
          %v1050 = vld [vmem:[#allocation2 + $0xe8] sm:$0xff]
          %v1051 = vld [vmem:[#allocation2 + $0xf0] sm:$0xff]
          %v1052 = vld [vmem:[#allocation2 + $0xf8] sm:$0xff]
          %1053 = vxpose.xlu0.b32.start [1/16] %v1021, 128
          %1054 = vxpose.xlu0.b32.cont [2/16] %v1022, 128
          %1055 = vxpose.xlu0.b32.cont [3/16] %v1023, 128
          %1056 = vxpose.xlu0.b32.cont [4/16] %v1024, 128
          %1057 = vxpose.xlu0.b32.cont [5/16] %v1025, 128
          %1058 = vxpose.xlu0.b32.cont [6/16] %v1026, 128
          %1059 = vxpose.xlu0.b32.cont [7/16] %v1027, 128
          %1060 = vxpose.xlu0.b32.cont [8/16] %v1028, 128
          %1061 = vxpose.xlu0.b32.cont [9/16] %v1029, 128
          %1062 = vxpose.xlu0.b32.cont [10/16] %v1030, 128
          %1063 = vxpose.xlu0.b32.cont [11/16] %v1031, 128
          %1064 = vxpose.xlu0.b32.cont [12/16] %v1032, 128
          %1065 = vxpose.xlu0.b32.cont [13/16] %v1033, 128
          %1066 = vxpose.xlu0.b32.cont [14/16] %v1034, 128
          %1067 = vxpose.xlu0.b32.cont [15/16] %v1035, 128
          %1068 = vxpose.xlu0.b32.end [16/16] %v1036, 128
          %v1069 = vpop.trf.xlu0
          %v1070 = vpop.trf.xlu0
          %v1071 = vpop.trf.xlu0
          %v1072 = vpop.trf.xlu0
          %v1073 = vpop.trf.xlu0
          %v1074 = vpop.trf.xlu0
          %v1075 = vpop.trf.xlu0
          %v1076 = vpop.trf.xlu0
          %v1077 = vpop.trf.xlu0
          %v1078 = vpop.trf.xlu0
          %v1079 = vpop.trf.xlu0
          %v1080 = vpop.trf.xlu0
          %v1081 = vpop.trf.xlu0
          %v1082 = vpop.trf.xlu0
          %v1083 = vpop.trf.xlu0
          %v1084 = vpop.trf.xlu0
          %1085 = vxpose.xlu0.b32.start [1/16] %v1037, 128
          %1086 = vxpose.xlu0.b32.cont [2/16] %v1038, 128
          %1087 = vxpose.xlu0.b32.cont [3/16] %v1039, 128
          %1088 = vxpose.xlu0.b32.cont [4/16] %v1040, 128
          %1089 = vxpose.xlu0.b32.cont [5/16] %v1041, 128
          %1090 = vxpose.xlu0.b32.cont [6/16] %v1042, 128
          %1091 = vxpose.xlu0.b32.cont [7/16] %v1043, 128
          %1092 = vxpose.xlu0.b32.cont [8/16] %v1044, 128
          %1093 = vxpose.xlu0.b32.cont [9/16] %v1045, 128
          %1094 = vxpose.xlu0.b32.cont [10/16] %v1046, 128
          %1095 = vxpose.xlu0.b32.cont [11/16] %v1047, 128
          %1096 = vxpose.xlu0.b32.cont [12/16] %v1048, 128
          %1097 = vxpose.xlu0.b32.cont [13/16] %v1049, 128
          %1098 = vxpose.xlu0.b32.cont [14/16] %v1050, 128
          %1099 = vxpose.xlu0.b32.cont [15/16] %v1051, 128
          %1100 = vxpose.xlu0.b32.end [16/16] %v1052, 128
          %v1101 = vpop.trf.xlu0
          %v1102 = vpop.trf.xlu0
          %v1103 = vpop.trf.xlu0
          %v1104 = vpop.trf.xlu0
          %v1105 = vpop.trf.xlu0
          %v1106 = vpop.trf.xlu0
          %v1107 = vpop.trf.xlu0
          %v1108 = vpop.trf.xlu0
          %v1109 = vpop.trf.xlu0
          %v1110 = vpop.trf.xlu0
          %v1111 = vpop.trf.xlu0
          %v1112 = vpop.trf.xlu0
          %v1113 = vpop.trf.xlu0
          %v1114 = vpop.trf.xlu0
          %v1115 = vpop.trf.xlu0
          %v1116 = vpop.trf.xlu0
          %s1117 = sld [smem:[#allocation3]]
          %v1118 = vstv %s1117
          %v1119 = vadd.f32 %v1069, %v1118
          %v1120 = vadd.f32 %v1101, %v1118
          %v1121 = vxor.u32 %v1119, 2147483648
          %v1122 = vxor.u32 %v1120, 2147483648
          %v1123 = vmul.f32 %v1121, 1.442695
          %v1124 = vpow.pop %v1123
          %v1125 = vmul.f32 %v1122, 1.442695
          %v1126 = vpow.pop %v1125
          %v1127 = vadd.f32 %v1124, 1.0
          %v1128 = vadd.f32 %v1126, 1.0
          %v1129 = vrcp.pop %v1127
          %v1130 = vmul.f32 1.0, %v1129
          %v1131 = vrcp.pop %v1128
          %v1132 = vmul.f32 1.0, %v1131
          %v1135 = vcombine.low %v1130, %v1132
          %v1137 = vunpack.c.l.s4 1966171168
          %v1138 = vunpack.c.0.s8 %v1137
          %v1139 = vlaneseq
          %v1140 = vshrl.u32 %v1139, 7
          %v1141 = vsub.s32 %v1138, %v1140
          %v1142 = vrot.slane %v1135, %v1141
          %v1144 = vunpack.c.l.s4 1966171168
          %v1145 = vunpack.c.0.s8 %v1144
          %v1146 = vlaneseq
          %v1147 = vshrl.u32 %v1146, 7
          %v1148 = vsub.s32 %v1145, %v1147
          %v1149 = vrot.slane %v1142, %v1148
          %v1151 = vlaneseq
          %vm1152 = vcmp.ge.s32.totalorder %v1151, 0
          %vm1153 = vcmp.lt.s32.totalorder %v1151, 256
          %vm1154 = vmand %vm1152, %vm1153
          %1155 = vst.msk [vmem:[%s234] sm:$0x3] %vm1154, %v1149
        $region48: #{tpu_custom_call.1} parent=31 // pred_fallthru
          _
        %s1156 = sand.u32 %s117, 1
        %s1157 = scalar_lea.sflag [#allocation6], %s1156
        %s1158 = sand.u32 %s117, 1
        %s1159 = smul.addr %s1158, 2
        %s1160 = scalar_lea.vmem [#allocation9], %s1159
        // Predicated region
        $region49: #{tpu_custom_call.1} parent=31 // pred_check
          %p1161 = pneg %p127
        $region50: #{tpu_custom_call.1} parent=31 // pred_check_branch
          %1163 = sbr.rel (%p1161) target = $region52
        $region51: #{tpu_custom_call.1} parent=31 // pred_region
          %s1164 = smul.u32 2, %s26
          %s1166 = ssub.s32 32, 32
          %1167 = vsyncadd %s1157, %s1166
          %s1168 = smul.addr %s1164, 16
          %s1169 = scalar_lea.hbm %s3, %s1168
          %s1171 = sshll.u32 %s1160, 4
          %s1172 = int_to_ptr.vmem [resolvable:$true] %s1171
          %1174 = dma.vmem_to_hbm [thread:$0]  %s1172, 32, %s1169, %s1157
        $region52: #{tpu_custom_call.1} parent=31 // pred_fallthru
          _
      $region32: #{tpu_custom_call.1} parent=5 // pred_fallthru
        _
      %p1175 = scmp.le.s32.totalorder 2, %s17
      // Predicated region
      $region53: #{tpu_custom_call.1} parent=5 // pred_check
        %p1176 = pneg %p1175
      $region54: #{tpu_custom_call.1} parent=5 // pred_check_branch
        %1178 = sbr.rel (%p1176) target = $region56
      $region55: #{tpu_custom_call.1} parent=5 // pred_region
        %s1179 = ssub.s32 %s17, 2
        // Predicated region
        $region57: #{tpu_custom_call.1} parent=55 // pred_check
          %p1180 = pneg %p133
        $region58: #{tpu_custom_call.1} parent=55 // pred_check_branch
          %1182 = sbr.rel (%p1180) target = $region60
        $region59: #{tpu_custom_call.1} parent=55 // pred_region
          %s1183 = sand.u32 %s118, 1
          %s1184 = scalar_lea.sflag [#allocation6], %s1183
          %s1185 = sand.u32 %s118, 1
          %s1186 = smul.addr %s1185, 2
          %s1187 = scalar_lea.vmem [#allocation9], %s1186
          %1188 = dma.done %s1184, 32
        $region60: #{tpu_custom_call.1} parent=55 // pred_fallthru
          _
      $region56: #{tpu_custom_call.1} parent=5 // pred_fallthru
        _
    $region6: #{tpu_custom_call.1} parent=1 // loop_footer
      %s21 = sadd.s32 1, %s17
    $region7: #{tpu_custom_call.1} parent=1 // loop_footer_branch
      %16 = sbr.rel target = $region3
    $region8: #{tpu_custom_call.1} parent=1 // loop_exit
      _
    %1189 = vsyncpa [#allocation5], 1
    %s1190 = scalar_lea.sflag [#allocation5], 1
    %1191 = vsyncpa %s1190, 1
    %1192 = vsyncpa [#allocation8], 1
    %1193 = vsyncpa [#allocation6], 1
    %s1194 = scalar_lea.sflag [#allocation6], 1
    %1195 = vsyncpa %s1194, 1

</llo_original>
